<compile_context>
chip_gen: v6e
topology: v6e:2x2x1
jax: 0.10.0
libtpu: 0.0.40
codegen_flags: <defaults>
</compile_context>

<pallas_src>
import jax
import jax.numpy as jnp
from jax.experimental import pallas as pl
from jax.experimental.pallas import tpu as pltpu

IN_DIM = 784
HID_DIM = 128
OUT_DIM = 10

OUT_PAD = 128    # lane-dense output slab (zero-padded N)
TB_MAX = 1024    # max batch tile: ~7.6 MiB VMEM total, safe on all gens


def _round_up(n, m):
    return ((n + m - 1) // m) * m


def _choose_batch_tile(B, tb_max=TB_MAX):
    """Batch tile: multiple of 8 (16 when possible, bf16 sublane packing),
    capped at tb_max, and split into >=2 grid steps when the batch is large
    enough so both v7x TensorCores get work."""
    if B <= 16:
        return _round_up(max(B, 1), 8)
    aligned = _round_up(B, 16)
    if aligned <= tb_max:
        return _round_up((aligned + 1) // 2, 16)   # >= 2 grid steps
    return tb_max


def mlp_kernel(x_ref, w1_ref, b1_ref, w2_ref, b2_ref, o_ref):
    # fc1 + ReLU: cast x/W1 to bf16 on the VPU right before the MXU (hidden
    # under the x DMA), accumulate in f32.
    x_bf = x_ref[...].astype(jnp.bfloat16)
    w1_bf = w1_ref[...].astype(jnp.bfloat16)
    h = jnp.dot(x_bf, w1_bf, preferred_element_type=jnp.float32)
    h = jnp.maximum(h + b1_ref[...], 0.0)          # (tb,128)+(1,128), f32 VPU
    # fc2 on a lane-dense 128-wide padded output slab; bf16 writeback.
    y = jnp.dot(h.astype(jnp.bfloat16), w2_ref[...].astype(jnp.bfloat16),
                preferred_element_type=jnp.float32)
    o_ref[...] = (y + b2_ref[...]).astype(o_ref.dtype)


def simple_model_forward(x, w1, b1, w2, b2, *, tb_max=TB_MAX):
    """x: (B, 784) f32; w1: (784,128); b1: (128,); w2: (128,10); b2: (10,).

    Returns (B, 10) f32.  Matmuls run on the MXU with bf16 inputs and f32
    accumulation.
    """
    B = x.shape[0]
    tb = _choose_batch_tile(B, tb_max)
    grid = (pl.cdiv(B, tb),)

    # Only the tiny arrays get wrapper-side copies: W2/b2 padded to 128 lanes.
    w2_p = jnp.pad(w2, ((0, 0), (0, OUT_PAD - OUT_DIM))).astype(jnp.float32)
    b1_2d = b1.reshape(1, HID_DIM).astype(jnp.float32)
    b2_2d = jnp.pad(b2, (0, OUT_PAD - OUT_DIM)).reshape(1, OUT_PAD).astype(jnp.float32)

    n_rows = grid[0] * tb
    flops = 2 * n_rows * (IN_DIM * HID_DIM + HID_DIM * OUT_PAD)
    bytes_accessed = (B * IN_DIM * 4              # x stream (f32, read once)
                      + IN_DIM * HID_DIM * 4      # W1 (f32, VMEM-resident)
                      + HID_DIM * OUT_PAD * 4     # W2 (f32, VMEM-resident)
                      + (HID_DIM + OUT_PAD) * 4   # biases
                      + B * OUT_PAD * 2)          # output slab (bf16)

    out = pl.pallas_call(
        mlp_kernel,
        out_shape=jax.ShapeDtypeStruct((B, OUT_PAD), jnp.bfloat16),
        grid_spec=pltpu.PrefetchScalarGridSpec(
            num_scalar_prefetch=0,
            grid=grid,
            in_specs=[
                pl.BlockSpec((tb, IN_DIM), lambda i: (i, 0)),          # x tile
                pl.BlockSpec((IN_DIM, HID_DIM), lambda i: (0, 0)),     # W1 (resident)
                pl.BlockSpec((1, HID_DIM), lambda i: (0, 0)),          # b1 (resident)
                pl.BlockSpec((HID_DIM, OUT_PAD), lambda i: (0, 0)),    # W2 (resident)
                pl.BlockSpec((1, OUT_PAD), lambda i: (0, 0)),          # b2 (resident)
            ],
            out_specs=pl.BlockSpec((tb, OUT_PAD), lambda i: (i, 0)),
        ),
        compiler_params=pltpu.CompilerParams(
            dimension_semantics=("parallel",)),
        cost_estimate=pl.CostEstimate(
            flops=flops, transcendentals=0, bytes_accessed=bytes_accessed),
    )(x, w1, b1_2d, w2_p, b2_2d)

    return out[:, :OUT_DIM].astype(jnp.float32)


def init_params(key):
    """Deterministic init mimicking torch nn.Linear (uniform +-1/sqrt(fan_in))."""
    k1, k2, k3, k4 = jax.random.split(key, 4)
    bound1 = 1.0 / jnp.sqrt(IN_DIM)
    bound2 = 1.0 / jnp.sqrt(HID_DIM)
    # stored already transposed vs. torch: (in, out)
    w1 = jax.random.uniform(k1, (IN_DIM, HID_DIM), jnp.float32, -bound1, bound1)
    b1 = jax.random.uniform(k2, (HID_DIM,), jnp.float32, -bound1, bound1)
    w2 = jax.random.uniform(k3, (HID_DIM, OUT_DIM), jnp.float32, -bound2, bound2)
    b2 = jax.random.uniform(k4, (OUT_DIM,), jnp.float32, -bound2, bound2)
    return w1, b1, w2, b2


if __name__ == "__main__":
    key = jax.random.PRNGKey(0)
    kx, kp = jax.random.split(key)

    B = 8
    x = jax.random.normal(kx, (B, IN_DIM), jnp.float32)
    w1, b1, w2, b2 = init_params(kp)

    out = simple_model_forward(x, w1, b1, w2, b2)
    out = jax.block_until_ready(out)
    assert out.shape == (B, OUT_DIM)

    # Reference along the same numeric path (bf16 MXU inputs, f32 accumulation,
    # bf16 output store).  Tolerance covers MXU-vs-XLA accumulation order plus
    # one bf16 ulp on the final rounding.
    h_ref = jnp.maximum(
        jnp.dot(x.astype(jnp.bfloat16), w1.astype(jnp.bfloat16),
                preferred_element_type=jnp.float32) + b1, 0.0)
    y_ref = jnp.dot(h_ref.astype(jnp.bfloat16), w2.astype(jnp.bfloat16),
                    preferred_element_type=jnp.float32) + b2
    ref_same_path = y_ref.astype(jnp.bfloat16).astype(jnp.float32)
    assert jnp.allclose(out, ref_same_path, atol=2e-2, rtol=2e-2)

    # Sanity check against the full-f32 reference (loose tol for bf16 path).
    ref_f32 = jnp.maximum(x @ w1 + b1, 0.0) @ w2 + b2
    assert jnp.allclose(out, ref_f32, atol=5e-2, rtol=5e-2)

    print("KERNEL_OK")
</pallas_src>

<mosaic_0001>
module attributes {stable_mosaic.version = 11 : i64} {
  func.func @mlp_kernel(%arg0: i32, %arg1: memref<8x784xf32, #tpu.memory_space<vmem>>, %arg2: memref<784x128xf32, #tpu.memory_space<vmem>>, %arg3: memref<1x128xf32, #tpu.memory_space<vmem>>, %arg4: memref<128x128xf32, #tpu.memory_space<vmem>>, %arg5: memref<1x128xf32, #tpu.memory_space<vmem>>, %arg6: memref<8x128xbf16, #tpu.memory_space<vmem>>) attributes {dimension_semantics = [#tpu.dimension_semantics<parallel>], iteration_bounds = array<i64: 1>, scalar_prefetch = 0 : i64, scratch_operands = 0 : i64, tpu.core_type = #tpu.core_type<tc>, window_params = [{transform_indices = @transform_0, window_bounds = array<i64: 8, 784>}, {pipeline_mode = #tpu.pipeline_mode<synchronous>, transform_indices = @transform_1, window_bounds = array<i64: 784, 128>}, {pipeline_mode = #tpu.pipeline_mode<synchronous>, transform_indices = @transform_2, window_bounds = array<i64: 1, 128>}, {pipeline_mode = #tpu.pipeline_mode<synchronous>, transform_indices = @transform_3, window_bounds = array<i64: 128, 128>}, {pipeline_mode = #tpu.pipeline_mode<synchronous>, transform_indices = @transform_4, window_bounds = array<i64: 1, 128>}, {transform_indices = @transform_5, window_bounds = array<i64: 8, 128>}]} {
    %c0 = arith.constant 0 : index
    %c0_0 = arith.constant 0 : index
    %0 = vector.load %arg1[%c0, %c0_0] : memref<8x784xf32, #tpu.memory_space<vmem>>, vector<8x784xf32>
    %1 = arith.truncf %0 : vector<8x784xf32> to vector<8x784xbf16>
    %c0_1 = arith.constant 0 : index
    %c0_2 = arith.constant 0 : index
    %2 = vector.load %arg2[%c0_1, %c0_2] : memref<784x128xf32, #tpu.memory_space<vmem>>, vector<784x128xf32>
    %3 = arith.truncf %2 : vector<784x128xf32> to vector<784x128xbf16>
    %cst = arith.constant dense<0.000000e+00> : vector<8x128xf32>
    %4 = tpu.matmul %1, %3, %cst {dimension_numbers = #tpu.dot_dimension_numbers<[1], [0], [0], [1], [0, 0, 1, 1], [], []>} : vector<8x784xbf16>, vector<784x128xbf16>, vector<8x128xf32> -> vector<8x128xf32>
    %c0_3 = arith.constant 0 : index
    %c0_4 = arith.constant 0 : index
    %5 = vector.load %arg3[%c0_3, %c0_4] : memref<1x128xf32, #tpu.memory_space<vmem>>, vector<1x128xf32>
    %6 = vector.broadcast %5 : vector<1x128xf32> to vector<8x128xf32>
    %7 = arith.addf %4, %6 : vector<8x128xf32>
    %cst_5 = arith.constant 0.000000e+00 : f32
    %8 = vector.broadcast %cst_5 : f32 to vector<8x128xf32>
    %9 = arith.maximumf %7, %8 : vector<8x128xf32>
    %10 = arith.truncf %9 : vector<8x128xf32> to vector<8x128xbf16>
    %c0_6 = arith.constant 0 : index
    %c0_7 = arith.constant 0 : index
    %11 = vector.load %arg4[%c0_6, %c0_7] : memref<128x128xf32, #tpu.memory_space<vmem>>, vector<128x128xf32>
    %12 = arith.truncf %11 : vector<128x128xf32> to vector<128x128xbf16>
    %cst_8 = arith.constant dense<0.000000e+00> : vector<8x128xf32>
    %13 = tpu.matmul %10, %12, %cst_8 {dimension_numbers = #tpu.dot_dimension_numbers<[1], [0], [0], [1], [0, 0, 1, 1], [], []>} : vector<8x128xbf16>, vector<128x128xbf16>, vector<8x128xf32> -> vector<8x128xf32>
    %c0_9 = arith.constant 0 : index
    %c0_10 = arith.constant 0 : index
    %14 = vector.load %arg5[%c0_9, %c0_10] : memref<1x128xf32, #tpu.memory_space<vmem>>, vector<1x128xf32>
    %15 = vector.broadcast %14 : vector<1x128xf32> to vector<8x128xf32>
    %16 = arith.addf %13, %15 : vector<8x128xf32>
    %17 = arith.truncf %16 : vector<8x128xf32> to vector<8x128xbf16>
    %c0_11 = arith.constant 0 : index
    %c0_12 = arith.constant 0 : index
    %18 = vector.load %arg6[%c0_11, %c0_12] : memref<8x128xbf16, #tpu.memory_space<vmem>>, vector<8x128xbf16>
    tpu.vector_store %arg6[%c0_11, %c0_12], %17 {strides = array<i32>} : memref<8x128xbf16, #tpu.memory_space<vmem>>, vector<8x128xbf16>,
    return
  }
  func.func @transform_0(%arg0: i32) -> (i32, i32) {
    %c0_i32 = arith.constant 0 : i32
    %c0_i32_0 = arith.constant 0 : i32
    return %arg0, %c0_i32 : i32, i32
  }
  func.func @transform_1(%arg0: i32) -> (i32, i32) {
    %c0_i32 = arith.constant 0 : i32
    %c0_i32_0 = arith.constant 0 : i32
    %c0_i32_1 = arith.constant 0 : i32
    return %c0_i32, %c0_i32_0 : i32, i32
  }
  func.func @transform_2(%arg0: i32) -> (i32, i32) {
    %c0_i32 = arith.constant 0 : i32
    %c0_i32_0 = arith.constant 0 : i32
    %c0_i32_1 = arith.constant 0 : i32
    return %c0_i32, %c0_i32_0 : i32, i32
  }
  func.func @transform_3(%arg0: i32) -> (i32, i32) {
    %c0_i32 = arith.constant 0 : i32
    %c0_i32_0 = arith.constant 0 : i32
    %c0_i32_1 = arith.constant 0 : i32
    return %c0_i32, %c0_i32_0 : i32, i32
  }
  func.func @transform_4(%arg0: i32) -> (i32, i32) {
    %c0_i32 = arith.constant 0 : i32
    %c0_i32_0 = arith.constant 0 : i32
    %c0_i32_1 = arith.constant 0 : i32
    return %c0_i32, %c0_i32_0 : i32, i32
  }
  func.func @transform_5(%arg0: i32) -> (i32, i32) {
    %c0_i32 = arith.constant 0 : i32
    %c0_i32_0 = arith.constant 0 : i32
    return %arg0, %c0_i32 : i32, i32
  }
}

</mosaic_0001>

<llo_original>
// kernel: tpu_custom_call.1
$region0: #{tpu_custom_call.1}
  #allocation0 [shape = 'u32[]', space=smem, size = 0x4, offset = 0x4, fixed_abs, tag = 'smem constant byte address 0x4 - core index']
  #allocation1 [shape = 'u32[144,128]{1,0:T(1,128)}', space=vmem, size = 0x12000, scoped, tag = 'internal scratch']
  %s0 = inlined_call_operand.hbm [shape: f32[8,784], index: 0, kind: input, shape index: {}]
  %s1 = inlined_call_operand.hbm [shape: f32[784,128], index: 1, kind: input, shape index: {}]
  %s2 = inlined_call_operand.vmem [shape: f32[1,128], index: 2, kind: input, shape index: {}]
  %s3 = inlined_call_operand.hbm [shape: f32[128,128], index: 3, kind: input, shape index: {}]
  %s4 = inlined_call_operand.vmem [shape: f32[1,128], index: 4, kind: input, shape index: {}]
  %s5 = inlined_call_operand.hbm [shape: bf16[8,128], index: 5, kind: output, shape index: {}]
  %s6 = sld [smem:[#allocation0]]
  $region42: #{tpu_custom_call.1} parent=0
    _
  %s8 = ssub.s32 1, %s6
  %s9 = scalar_select 0, %s8, %s6
  $region1: #{tpu_custom_call.1} parent=0
    #allocation2 [shape = 'u8[28672]{0}', space=vmem, size = 0x7000, scoped, tag = 'input window, operand 0, single buffered']
    #allocation3 [shape = 's32[1]{0}', space=sflag, size = 0x4, scoped, tag = 'scoped memory for tpu_custom_call.1']
    #allocation4 [shape = 's32[1]{0}', space=sflag, size = 0x4, scoped, tag = 'scoped memory for tpu_custom_call.1']
    #allocation5 [shape = 'u8[401408]{0}', space=vmem, size = 0x62000, scoped, tag = 'input window, operand 1, single buffered']
    #allocation6 [shape = 's32[1]{0}', space=sflag, size = 0x4, scoped, tag = 'scoped memory for tpu_custom_call.1']
    #allocation7 [shape = 'u8[65536]{0}', space=vmem, size = 0x10000, scoped, tag = 'input window, operand 3, single buffered']
    #allocation8 [shape = 'u8[2048]{0}', space=vmem, size = 0x800, scoped, tag = 'output window, operand 0, single buffered']
    %10 = vsyncpa [#allocation3], 0
    %11 = vsyncpa [#allocation6], 0
    %12 = vsyncpa [#allocation4], 0
    // Predicated region
    $region2: #{tpu_custom_call.1} parent=1 // pred_check
      _
    $region3: #{tpu_custom_call.1} parent=1 // pred_check_branch
      %14 = sbr.rel (0) target = $region5
    $region4: #{tpu_custom_call.1} parent=1 // pred_region
      %s16 = ssub.s32 896, 896
      %17 = vsyncadd [#allocation3], %s16
      %s19 = sshll.u32 [#allocation2], 4
      %s20 = int_to_ptr.vmem [resolvable:$true] %s19
      %22 = dma.hbm_to_vmem [thread:$0]  %s0, 896, %s20, [#allocation3]
    $region5: #{tpu_custom_call.1} parent=1 // pred_fallthru
      _
    // Predicated region
    $region6: #{tpu_custom_call.1} parent=1 // pred_check
      _
    $region7: #{tpu_custom_call.1} parent=1 // pred_check_branch
      %24 = sbr.rel (0) target = $region9
    $region8: #{tpu_custom_call.1} parent=1 // pred_region
      %s26 = ssub.s32 12544, 12544
      %27 = vsyncadd [#allocation6], %s26
      %s28 = sshll.u32 [#allocation5], 4
      %s29 = int_to_ptr.vmem [resolvable:$true] %s28
      %34 = dma.hbm_to_vmem [thread:$0]  %s1, 12544, %s29, [#allocation6], 128, 128, 8
    $region9: #{tpu_custom_call.1} parent=1 // pred_fallthru
      _
    // Predicated region
    $region10: #{tpu_custom_call.1} parent=1 // pred_check
      _
    $region11: #{tpu_custom_call.1} parent=1 // pred_check_branch
      %36 = sbr.rel (0) target = $region13
    $region12: #{tpu_custom_call.1} parent=1 // pred_region
      _
    $region13: #{tpu_custom_call.1} parent=1 // pred_fallthru
      _
    // Predicated region
    $region14: #{tpu_custom_call.1} parent=1 // pred_check
      _
    $region15: #{tpu_custom_call.1} parent=1 // pred_check_branch
      %38 = sbr.rel (0) target = $region17
    $region16: #{tpu_custom_call.1} parent=1 // pred_region
      %s40 = ssub.s32 2048, 2048
      %41 = vsyncadd [#allocation6], %s40
      %s42 = sshll.u32 [#allocation7], 4
      %s43 = int_to_ptr.vmem [resolvable:$true] %s42
      %48 = dma.hbm_to_vmem [thread:$0]  %s3, 2048, %s43, [#allocation6], 128, 128, 8
    $region17: #{tpu_custom_call.1} parent=1 // pred_fallthru
      _
    // Predicated region
    $region18: #{tpu_custom_call.1} parent=1 // pred_check
      _
    $region19: #{tpu_custom_call.1} parent=1 // pred_check_branch
      %50 = sbr.rel (0) target = $region21
    $region20: #{tpu_custom_call.1} parent=1 // pred_region
      _
    $region21: #{tpu_custom_call.1} parent=1 // pred_fallthru
      _
    // Predicated region
    $region22: #{tpu_custom_call.1} parent=1 // pred_check
      _
    $region23: #{tpu_custom_call.1} parent=1 // pred_check_branch
      %52 = sbr.rel (0) target = $region25
    $region24: #{tpu_custom_call.1} parent=1 // pred_region
      %53 = dma.done [#allocation3], 896
    $region25: #{tpu_custom_call.1} parent=1 // pred_fallthru
      _
    // Predicated region
    $region26: #{tpu_custom_call.1} parent=1 // pred_check
      _
    $region27: #{tpu_custom_call.1} parent=1 // pred_check_branch
      %55 = sbr.rel (0) target = $region29
    $region28: #{tpu_custom_call.1} parent=1 // pred_region
      %56 = dma.done [#allocation6], 12544
    $region29: #{tpu_custom_call.1} parent=1 // pred_fallthru
      _
    // Predicated region
    $region30: #{tpu_custom_call.1} parent=1 // pred_check
      _
    $region31: #{tpu_custom_call.1} parent=1 // pred_check_branch
      %58 = sbr.rel (0) target = $region33
    $region32: #{tpu_custom_call.1} parent=1 // pred_region
      %59 = dma.done [#allocation6], 2048
    $region33: #{tpu_custom_call.1} parent=1 // pred_fallthru
      _
    %v61 = vld [vmem:[#allocation2] sm:$0xff]
    %v62 = vld [vmem:[#allocation2 + $0x8] sm:$0xff]
    %v63 = vld [vmem:[#allocation2 + $0x10] sm:$0xff]
    %v64 = vld [vmem:[#allocation2 + $0x18] sm:$0xff]
    %v65 = vld [vmem:[#allocation2 + $0x20] sm:$0xff]
    %v66 = vld [vmem:[#allocation2 + $0x28] sm:$0xff]
    %v67 = vld [vmem:[#allocation2 + $0x30] sm:$0xff]
    %v68 = vpack.c.bf16 %v61, %v61
    %v69 = vpack.c.bf16 %v62, %v62
    %v70 = vpack.c.bf16 %v63, %v63
    %v71 = vpack.c.bf16 %v64, %v64
    %v72 = vpack.c.bf16 %v65, %v65
    %v73 = vpack.c.bf16 %v66, %v66
    %v74 = vpack.c.bf16 %v67, %v67
    %v75 = vld [vmem:[#allocation5] sm:$0xff]
    %v76 = vld [vmem:[#allocation5 + $0x8] sm:$0xff]
    %v77 = vld [vmem:[#allocation5 + $0x10] sm:$0xff]
    %v78 = vld [vmem:[#allocation5 + $0x18] sm:$0xff]
    %v79 = vld [vmem:[#allocation5 + $0x20] sm:$0xff]
    %v80 = vld [vmem:[#allocation5 + $0x28] sm:$0xff]
    %v81 = vld [vmem:[#allocation5 + $0x30] sm:$0xff]
    %v82 = vld [vmem:[#allocation5 + $0x38] sm:$0xff]
    %v83 = vld [vmem:[#allocation5 + $0x40] sm:$0xff]
    %v84 = vld [vmem:[#allocation5 + $0x48] sm:$0xff]
    %v85 = vld [vmem:[#allocation5 + $0x50] sm:$0xff]
    %v86 = vld [vmem:[#allocation5 + $0x58] sm:$0xff]
    %v87 = vld [vmem:[#allocation5 + $0x60] sm:$0xff]
    %v88 = vld [vmem:[#allocation5 + $0x68] sm:$0xff]
    %v89 = vld [vmem:[#allocation5 + $0x70] sm:$0xff]
    %v90 = vld [vmem:[#allocation5 + $0x78] sm:$0xff]
    %v91 = vld [vmem:[#allocation5 + $0x80] sm:$0xff]
    %v92 = vld [vmem:[#allocation5 + $0x88] sm:$0xff]
    %v93 = vld [vmem:[#allocation5 + $0x90] sm:$0xff]
    %v94 = vld [vmem:[#allocation5 + $0x98] sm:$0xff]
    %v95 = vld [vmem:[#allocation5 + $0xa0] sm:$0xff]
    %v96 = vld [vmem:[#allocation5 + $0xa8] sm:$0xff]
    %v97 = vld [vmem:[#allocation5 + $0xb0] sm:$0xff]
    %v98 = vld [vmem:[#allocation5 + $0xb8] sm:$0xff]
    %v99 = vld [vmem:[#allocation5 + $0xc0] sm:$0xff]
    %v100 = vld [vmem:[#allocation5 + $0xc8] sm:$0xff]
    %v101 = vld [vmem:[#allocation5 + $0xd0] sm:$0xff]
    %v102 = vld [vmem:[#allocation5 + $0xd8] sm:$0xff]
    %v103 = vld [vmem:[#allocation5 + $0xe0] sm:$0xff]
    %v104 = vld [vmem:[#allocation5 + $0xe8] sm:$0xff]
    %v105 = vld [vmem:[#allocation5 + $0xf0] sm:$0xff]
    %v106 = vld [vmem:[#allocation5 + $0xf8] sm:$0xff]
    %v107 = vld [vmem:[#allocation5 + $0x100] sm:$0xff]
    %v108 = vld [vmem:[#allocation5 + $0x108] sm:$0xff]
    %v109 = vld [vmem:[#allocation5 + $0x110] sm:$0xff]
    %v110 = vld [vmem:[#allocation5 + $0x118] sm:$0xff]
    %v111 = vld [vmem:[#allocation5 + $0x120] sm:$0xff]
    %v112 = vld [vmem:[#allocation5 + $0x128] sm:$0xff]
    %v113 = vld [vmem:[#allocation5 + $0x130] sm:$0xff]
    %v114 = vld [vmem:[#allocation5 + $0x138] sm:$0xff]
    %v115 = vld [vmem:[#allocation5 + $0x140] sm:$0xff]
    %v116 = vld [vmem:[#allocation5 + $0x148] sm:$0xff]
    %v117 = vld [vmem:[#allocation5 + $0x150] sm:$0xff]
    %v118 = vld [vmem:[#allocation5 + $0x158] sm:$0xff]
    %v119 = vld [vmem:[#allocation5 + $0x160] sm:$0xff]
    %v120 = vld [vmem:[#allocation5 + $0x168] sm:$0xff]
    %v121 = vld [vmem:[#allocation5 + $0x170] sm:$0xff]
    %v122 = vld [vmem:[#allocation5 + $0x178] sm:$0xff]
    %v123 = vld [vmem:[#allocation5 + $0x180] sm:$0xff]
    %v124 = vld [vmem:[#allocation5 + $0x188] sm:$0xff]
    %v125 = vld [vmem:[#allocation5 + $0x190] sm:$0xff]
    %v126 = vld [vmem:[#allocation5 + $0x198] sm:$0xff]
    %v127 = vld [vmem:[#allocation5 + $0x1a0] sm:$0xff]
    %v128 = vld [vmem:[#allocation5 + $0x1a8] sm:$0xff]
    %v129 = vld [vmem:[#allocation5 + $0x1b0] sm:$0xff]
    %v130 = vld [vmem:[#allocation5 + $0x1b8] sm:$0xff]
    %v131 = vld [vmem:[#allocation5 + $0x1c0] sm:$0xff]
    %v132 = vld [vmem:[#allocation5 + $0x1c8] sm:$0xff]
    %v133 = vld [vmem:[#allocation5 + $0x1d0] sm:$0xff]
    %v134 = vld [vmem:[#allocation5 + $0x1d8] sm:$0xff]
    %v135 = vld [vmem:[#allocation5 + $0x1e0] sm:$0xff]
    %v136 = vld [vmem:[#allocation5 + $0x1e8] sm:$0xff]
    %v137 = vld [vmem:[#allocation5 + $0x1f0] sm:$0xff]
    %v138 = vld [vmem:[#allocation5 + $0x1f8] sm:$0xff]
    %v139 = vld [vmem:[#allocation5 + $0x200] sm:$0xff]
    %v140 = vld [vmem:[#allocation5 + $0x208] sm:$0xff]
    %v141 = vld [vmem:[#allocation5 + $0x210] sm:$0xff]
    %v142 = vld [vmem:[#allocation5 + $0x218] sm:$0xff]
    %v143 = vld [vmem:[#allocation5 + $0x220] sm:$0xff]
    %v144 = vld [vmem:[#allocation5 + $0x228] sm:$0xff]
    %v145 = vld [vmem:[#allocation5 + $0x230] sm:$0xff]
    %v146 = vld [vmem:[#allocation5 + $0x238] sm:$0xff]
    %v147 = vld [vmem:[#allocation5 + $0x240] sm:$0xff]
    %v148 = vld [vmem:[#allocation5 + $0x248] sm:$0xff]
    %v149 = vld [vmem:[#allocation5 + $0x250] sm:$0xff]
    %v150 = vld [vmem:[#allocation5 + $0x258] sm:$0xff]
    %v151 = vld [vmem:[#allocation5 + $0x260] sm:$0xff]
    %v152 = vld [vmem:[#allocation5 + $0x268] sm:$0xff]
    %v153 = vld [vmem:[#allocation5 + $0x270] sm:$0xff]
    %v154 = vld [vmem:[#allocation5 + $0x278] sm:$0xff]
    %v155 = vld [vmem:[#allocation5 + $0x280] sm:$0xff]
    %v156 = vld [vmem:[#allocation5 + $0x288] sm:$0xff]
    %v157 = vld [vmem:[#allocation5 + $0x290] sm:$0xff]
    %v158 = vld [vmem:[#allocation5 + $0x298] sm:$0xff]
    %v159 = vld [vmem:[#allocation5 + $0x2a0] sm:$0xff]
    %v160 = vld [vmem:[#allocation5 + $0x2a8] sm:$0xff]
    %v161 = vld [vmem:[#allocation5 + $0x2b0] sm:$0xff]
    %v162 = vld [vmem:[#allocation5 + $0x2b8] sm:$0xff]
    %v163 = vld [vmem:[#allocation5 + $0x2c0] sm:$0xff]
    %v164 = vld [vmem:[#allocation5 + $0x2c8] sm:$0xff]
    %v165 = vld [vmem:[#allocation5 + $0x2d0] sm:$0xff]
    %v166 = vld [vmem:[#allocation5 + $0x2d8] sm:$0xff]
    %v167 = vld [vmem:[#allocation5 + $0x2e0] sm:$0xff]
    %v168 = vld [vmem:[#allocation5 + $0x2e8] sm:$0xff]
    %v169 = vld [vmem:[#allocation5 + $0x2f0] sm:$0xff]
    %v170 = vld [vmem:[#allocation5 + $0x2f8] sm:$0xff]
    %v171 = vld [vmem:[#allocation5 + $0x300] sm:$0xff]
    %v172 = vld [vmem:[#allocation5 + $0x308] sm:$0xff]
    %v173 = vpack.c.bf16 %v76, %v75
    %v174 = vpack.c.bf16 %v78, %v77
    %v175 = vpack.c.bf16 %v80, %v79
    %v176 = vpack.c.bf16 %v82, %v81
    %v177 = vpack.c.bf16 %v84, %v83
    %v178 = vpack.c.bf16 %v86, %v85
    %v179 = vpack.c.bf16 %v88, %v87
    %v180 = vpack.c.bf16 %v90, %v89
    %v181 = vpack.c.bf16 %v92, %v91
    %v182 = vpack.c.bf16 %v94, %v93
    %v183 = vpack.c.bf16 %v96, %v95
    %v184 = vpack.c.bf16 %v98, %v97
    %v185 = vpack.c.bf16 %v100, %v99
    %v186 = vpack.c.bf16 %v102, %v101
    %v187 = vpack.c.bf16 %v104, %v103
    %v188 = vpack.c.bf16 %v106, %v105
    %v189 = vpack.c.bf16 %v108, %v107
    %v190 = vpack.c.bf16 %v110, %v109
    %v191 = vpack.c.bf16 %v112, %v111
    %v192 = vpack.c.bf16 %v114, %v113
    %v193 = vpack.c.bf16 %v116, %v115
    %v194 = vpack.c.bf16 %v118, %v117
    %v195 = vpack.c.bf16 %v120, %v119
    %v196 = vpack.c.bf16 %v122, %v121
    %v197 = vpack.c.bf16 %v124, %v123
    %v198 = vpack.c.bf16 %v126, %v125
    %v199 = vpack.c.bf16 %v128, %v127
    %v200 = vpack.c.bf16 %v130, %v129
    %v201 = vpack.c.bf16 %v132, %v131
    %v202 = vpack.c.bf16 %v134, %v133
    %v203 = vpack.c.bf16 %v136, %v135
    %v204 = vpack.c.bf16 %v138, %v137
    %v205 = vpack.c.bf16 %v140, %v139
    %v206 = vpack.c.bf16 %v142, %v141
    %v207 = vpack.c.bf16 %v144, %v143
    %v208 = vpack.c.bf16 %v146, %v145
    %v209 = vpack.c.bf16 %v148, %v147
    %v210 = vpack.c.bf16 %v150, %v149
    %v211 = vpack.c.bf16 %v152, %v151
    %v212 = vpack.c.bf16 %v154, %v153
    %v213 = vpack.c.bf16 %v156, %v155
    %v214 = vpack.c.bf16 %v158, %v157
    %v215 = vpack.c.bf16 %v160, %v159
    %v216 = vpack.c.bf16 %v162, %v161
    %v217 = vpack.c.bf16 %v164, %v163
    %v218 = vpack.c.bf16 %v166, %v165
    %v219 = vpack.c.bf16 %v168, %v167
    %v220 = vpack.c.bf16 %v170, %v169
    %v221 = vpack.c.bf16 %v172, %v171
    %v222 = vld [vmem:[%s2] sm:$0x1]
    %v224 = vlaneseq
    %v225 = vshrl.u32 %v224, 7
    %v226 = vsub.s32 0, %v225
    %v227 = vrot.slane %v222, %v226
    %vm229 = vcmask 130048
    %v231 = vsel %vm229, %v74, 0
    %233 = vmatprep.subr.bf16.mxu0 0
    %234 = vmatpush1.bf16.msra.mxu0 %v180
    %235 = vmatprep.subr.bf16.mxu0 0
    %236 = vmatpush1.bf16.msra.mxu0 %v179
    %237 = vmatprep.subr.bf16.mxu0 0
    %238 = vmatpush1.bf16.msra.mxu0 %v178
    %239 = vmatprep.subr.bf16.mxu0 0
    %240 = vmatpush1.bf16.msra.mxu0 %v177
    %241 = vmatprep.subr.bf16.mxu0 0
    %242 = vmatpush1.bf16.msra.mxu0 %v176
    %243 = vmatprep.subr.bf16.mxu0 0
    %244 = vmatpush1.bf16.msra.mxu0 %v175
    %245 = vmatprep.subr.bf16.mxu0 0
    %246 = vmatpush1.bf16.msra.mxu0 %v174
    %247 = vmatprep.subr.bf16.mxu0 0
    %248 = vmatpush1.bf16.msra.mxu0 %v173
    %249 = vmatprep.subr.bf16.mxu0 0
    %250 = vmatpush2.bf16.msra.mxu0 %v188
    %251 = vmatprep.subr.bf16.mxu0 0
    %252 = vmatpush2.bf16.msra.mxu0 %v187
    %253 = vmatprep.subr.bf16.mxu0 0
    %254 = vmatpush2.bf16.msra.mxu0 %v186
    %255 = vmatprep.subr.bf16.mxu0 0
    %256 = vmatpush2.bf16.msra.mxu0 %v185
    %257 = vmatprep.subr.bf16.mxu0 0
    %258 = vmatpush2.bf16.msra.mxu0 %v184
    %259 = vmatprep.subr.bf16.mxu0 0
    %260 = vmatpush2.bf16.msra.mxu0 %v183
    %261 = vmatprep.subr.bf16.mxu0 0
    %262 = vmatpush2.bf16.msra.mxu0 %v182
    %263 = vmatprep.subr.bf16.mxu0 0
    %264 = vmatpush2.bf16.msra.mxu0 %v181
    %265 = vmatprep.mubr.bf16.mxu0 %v69
    %266 = vmatmul.mubr.bf16.gmra.mxu0 %v68
    %v267 = vpop.f32.mrf.mxu0
    %v268 = vadd.f32 %v227, %v267
    %v269 = vpop.f32.mrf.mxu0
    %v270 = vpop.f32.mrf.mxu0
    %v271 = vpop.f32.mrf.mxu0
    %272 = vdwg.mxu0
    %273 = vmatprep.subr.bf16.mxu0 0
    %274 = vmatpush1.bf16.msra.mxu0 %v196
    %275 = vmatprep.subr.bf16.mxu0 0
    %276 = vmatpush1.bf16.msra.mxu0 %v195
    %277 = vmatprep.subr.bf16.mxu0 0
    %278 = vmatpush1.bf16.msra.mxu0 %v194
    %279 = vmatprep.subr.bf16.mxu0 0
    %280 = vmatpush1.bf16.msra.mxu0 %v193
    %281 = vmatprep.subr.bf16.mxu0 0
    %282 = vmatpush1.bf16.msra.mxu0 %v192
    %283 = vmatprep.subr.bf16.mxu0 0
    %284 = vmatpush1.bf16.msra.mxu0 %v191
    %285 = vmatprep.subr.bf16.mxu0 0
    %286 = vmatpush1.bf16.msra.mxu0 %v190
    %287 = vmatprep.subr.bf16.mxu0 0
    %288 = vmatpush1.bf16.msra.mxu0 %v189
    %289 = vmatprep.subr.bf16.mxu0 0
    %290 = vmatpush2.bf16.msra.mxu0 %v204
    %291 = vmatprep.subr.bf16.mxu0 0
    %292 = vmatpush2.bf16.msra.mxu0 %v203
    %293 = vmatprep.subr.bf16.mxu0 0
    %294 = vmatpush2.bf16.msra.mxu0 %v202
    %295 = vmatprep.subr.bf16.mxu0 0
    %296 = vmatpush2.bf16.msra.mxu0 %v201
    %297 = vmatprep.subr.bf16.mxu0 0
    %298 = vmatpush2.bf16.msra.mxu0 %v200
    %299 = vmatprep.subr.bf16.mxu0 0
    %300 = vmatpush2.bf16.msra.mxu0 %v199
    %301 = vmatprep.subr.bf16.mxu0 0
    %302 = vmatpush2.bf16.msra.mxu0 %v198
    %303 = vmatprep.subr.bf16.mxu0 0
    %304 = vmatpush2.bf16.msra.mxu0 %v197
    %305 = vmatprep.mubr.bf16.mxu0 %v71
    %306 = vmatmul.mubr.bf16.gmra.mxu0 %v70
    %v307 = vpop.f32.mrf.mxu0
    %v308 = vadd.f32 %v268, %v307
    %v309 = vpop.f32.mrf.mxu0
    %v310 = vpop.f32.mrf.mxu0
    %v311 = vpop.f32.mrf.mxu0
    %312 = vdwg.mxu0
    %313 = vmatprep.subr.bf16.mxu0 0
    %314 = vmatpush1.bf16.msra.mxu0 %v212
    %315 = vmatprep.subr.bf16.mxu0 0
    %316 = vmatpush1.bf16.msra.mxu0 %v211
    %317 = vmatprep.subr.bf16.mxu0 0
    %318 = vmatpush1.bf16.msra.mxu0 %v210
    %319 = vmatprep.subr.bf16.mxu0 0
    %320 = vmatpush1.bf16.msra.mxu0 %v209
    %321 = vmatprep.subr.bf16.mxu0 0
    %322 = vmatpush1.bf16.msra.mxu0 %v208
    %323 = vmatprep.subr.bf16.mxu0 0
    %324 = vmatpush1.bf16.msra.mxu0 %v207
    %325 = vmatprep.subr.bf16.mxu0 0
    %326 = vmatpush1.bf16.msra.mxu0 %v206
    %327 = vmatprep.subr.bf16.mxu0 0
    %328 = vmatpush1.bf16.msra.mxu0 %v205
    %329 = vmatprep.subr.bf16.mxu0 0
    %330 = vmatpush2.bf16.msra.mxu0 %v220
    %331 = vmatprep.subr.bf16.mxu0 0
    %332 = vmatpush2.bf16.msra.mxu0 %v219
    %333 = vmatprep.subr.bf16.mxu0 0
    %334 = vmatpush2.bf16.msra.mxu0 %v218
    %335 = vmatprep.subr.bf16.mxu0 0
    %336 = vmatpush2.bf16.msra.mxu0 %v217
    %337 = vmatprep.subr.bf16.mxu0 0
    %338 = vmatpush2.bf16.msra.mxu0 %v216
    %339 = vmatprep.subr.bf16.mxu0 0
    %340 = vmatpush2.bf16.msra.mxu0 %v215
    %341 = vmatprep.subr.bf16.mxu0 0
    %342 = vmatpush2.bf16.msra.mxu0 %v214
    %343 = vmatprep.subr.bf16.mxu0 0
    %344 = vmatpush2.bf16.msra.mxu0 %v213
    %345 = vmatprep.mubr.bf16.mxu0 %v73
    %346 = vmatmul.mubr.bf16.gmra.mxu0 %v72
    %v347 = vpop.f32.mrf.mxu0
    %v348 = vadd.f32 %v308, %v347
    %v349 = vpop.f32.mrf.mxu0
    %v350 = vpop.f32.mrf.mxu0
    %v351 = vpop.f32.mrf.mxu0
    %352 = vdwg.mxu0
    %353 = vmatprep.subr.bf16.mxu0 0
    %354 = vmatpush1.bf16.msra.mxu0 0
    %355 = vmatprep.subr.bf16.mxu0 0
    %356 = vmatpush1.bf16.msra.mxu0 0
    %357 = vmatprep.subr.bf16.mxu0 0
    %358 = vmatpush1.bf16.msra.mxu0 0
    %359 = vmatprep.subr.bf16.mxu0 0
    %360 = vmatpush1.bf16.msra.mxu0 0
    %361 = vmatprep.subr.bf16.mxu0 0
    %362 = vmatpush1.bf16.msra.mxu0 0
    %363 = vmatprep.subr.bf16.mxu0 0
    %364 = vmatpush1.bf16.msra.mxu0 0
    %365 = vmatprep.subr.bf16.mxu0 0
    %366 = vmatpush1.bf16.msra.mxu0 0
    %367 = vmatprep.subr.bf16.mxu0 0
    %368 = vmatpush1.bf16.msra.mxu0 %v221
    %369 = vmatprep.subr.bf16.mxu0 0
    %370 = vmatpush2.bf16.msra.mxu0 0
    %371 = vmatprep.subr.bf16.mxu0 0
    %372 = vmatpush2.bf16.msra.mxu0 0
    %373 = vmatprep.subr.bf16.mxu0 0
    %374 = vmatpush2.bf16.msra.mxu0 0
    %375 = vmatprep.subr.bf16.mxu0 0
    %376 = vmatpush2.bf16.msra.mxu0 0
    %377 = vmatprep.subr.bf16.mxu0 0
    %378 = vmatpush2.bf16.msra.mxu0 0
    %379 = vmatprep.subr.bf16.mxu0 0
    %380 = vmatpush2.bf16.msra.mxu0 0
    %381 = vmatprep.subr.bf16.mxu0 0
    %382 = vmatpush2.bf16.msra.mxu0 0
    %383 = vmatprep.subr.bf16.mxu0 0
    %384 = vmatpush2.bf16.msra.mxu0 0
    %385 = vmatprep.mubr.bf16.mxu0 0
    %386 = vmatmul.mubr.bf16.gmra.mxu0 %v231
    %v387 = vpop.f32.mrf.mxu0
    %v388 = vadd.f32 %v348, %v387
    %v389 = vpop.f32.mrf.mxu0
    %v390 = vpop.f32.mrf.mxu0
    %v391 = vpop.f32.mrf.mxu0
    %392 = vdwg.mxu0
    %v393 = vmax.f32 %v388, 0.0
    %v394 = vpack.c.bf16 %v393, %v393
    %v395 = vld [vmem:[#allocation7] sm:$0xff]
    %v396 = vld [vmem:[#allocation7 + $0x8] sm:$0xff]
    %v397 = vld [vmem:[#allocation7 + $0x10] sm:$0xff]
    %v398 = vld [vmem:[#allocation7 + $0x18] sm:$0xff]
    %v399 = vld [vmem:[#allocation7 + $0x20] sm:$0xff]
    %v400 = vld [vmem:[#allocation7 + $0x28] sm:$0xff]
    %v401 = vld [vmem:[#allocation7 + $0x30] sm:$0xff]
    %v402 = vld [vmem:[#allocation7 + $0x38] sm:$0xff]
    %v403 = vld [vmem:[#allocation7 + $0x40] sm:$0xff]
    %v404 = vld [vmem:[#allocation7 + $0x48] sm:$0xff]
    %v405 = vld [vmem:[#allocation7 + $0x50] sm:$0xff]
    %v406 = vld [vmem:[#allocation7 + $0x58] sm:$0xff]
    %v407 = vld [vmem:[#allocation7 + $0x60] sm:$0xff]
    %v408 = vld [vmem:[#allocation7 + $0x68] sm:$0xff]
    %v409 = vld [vmem:[#allocation7 + $0x70] sm:$0xff]
    %v410 = vld [vmem:[#allocation7 + $0x78] sm:$0xff]
    %v411 = vpack.c.bf16 %v396, %v395
    %v412 = vpack.c.bf16 %v398, %v397
    %v413 = vpack.c.bf16 %v400, %v399
    %v414 = vpack.c.bf16 %v402, %v401
    %v415 = vpack.c.bf16 %v404, %v403
    %v416 = vpack.c.bf16 %v406, %v405
    %v417 = vpack.c.bf16 %v408, %v407
    %v418 = vpack.c.bf16 %v410, %v409
    %v419 = vld [vmem:[%s4] sm:$0x1]
    %v421 = vlaneseq
    %v422 = vshrl.u32 %v421, 7
    %v423 = vsub.s32 0, %v422
    %v424 = vrot.slane %v419, %v423
    %426 = vmatprep.subr.bf16.mxu0 0
    %427 = vmatpush1.bf16.msra.mxu0 %v418
    %428 = vmatprep.subr.bf16.mxu0 0
    %429 = vmatpush1.bf16.msra.mxu0 %v417
    %430 = vmatprep.subr.bf16.mxu0 0
    %431 = vmatpush1.bf16.msra.mxu0 %v416
    %432 = vmatprep.subr.bf16.mxu0 0
    %433 = vmatpush1.bf16.msra.mxu0 %v415
    %434 = vmatprep.subr.bf16.mxu0 0
    %435 = vmatpush1.bf16.msra.mxu0 %v414
    %436 = vmatprep.subr.bf16.mxu0 0
    %437 = vmatpush1.bf16.msra.mxu0 %v413
    %438 = vmatprep.subr.bf16.mxu0 0
    %439 = vmatpush1.bf16.msra.mxu0 %v412
    %440 = vmatprep.subr.bf16.mxu0 0
    %441 = vmatpush1.bf16.msra.mxu0 %v411
    %442 = vmatprep.subr.bf16.mxu0 0
    %443 = vmatpush2.bf16.msra.mxu0 0
    %444 = vmatprep.subr.bf16.mxu0 0
    %445 = vmatpush2.bf16.msra.mxu0 0
    %446 = vmatprep.subr.bf16.mxu0 0
    %447 = vmatpush2.bf16.msra.mxu0 0
    %448 = vmatprep.subr.bf16.mxu0 0
    %449 = vmatpush2.bf16.msra.mxu0 0
    %450 = vmatprep.subr.bf16.mxu0 0
    %451 = vmatpush2.bf16.msra.mxu0 0
    %452 = vmatprep.subr.bf16.mxu0 0
    %453 = vmatpush2.bf16.msra.mxu0 0
    %454 = vmatprep.subr.bf16.mxu0 0
    %455 = vmatpush2.bf16.msra.mxu0 0
    %456 = vmatprep.subr.bf16.mxu0 0
    %457 = vmatpush2.bf16.msra.mxu0 0
    %458 = vmatprep.mubr.bf16.mxu0 0
    %459 = vmatmul.mubr.bf16.gmra.mxu0 %v394
    %v460 = vpop.f32.mrf.mxu0
    %v461 = vadd.f32 %v424, %v460
    %v462 = vpop.f32.mrf.mxu0
    %v463 = vpop.f32.mrf.mxu0
    %v464 = vpop.f32.mrf.mxu0
    %465 = vdwg.mxu0
    %v466 = vpack.c.bf16 %v461, %v461
    %467 = vst [vmem:[#allocation8] sm:$0xf] %v466
    // Predicated region
    $region34: #{tpu_custom_call.1} parent=1 // pred_check
      _
    $region35: #{tpu_custom_call.1} parent=1 // pred_check_branch
      %469 = sbr.rel (0) target = $region37
    $region36: #{tpu_custom_call.1} parent=1 // pred_region
      %s471 = ssub.s32 64, 64
      %472 = vsyncadd [#allocation4], %s471
      %s474 = sshll.u32 [#allocation8], 4
      %s475 = int_to_ptr.vmem [resolvable:$true] %s474
      %477 = dma.vmem_to_hbm [thread:$0]  %s475, 64, %s5, [#allocation4]
    $region37: #{tpu_custom_call.1} parent=1 // pred_fallthru
      _
    // Predicated region
    $region38: #{tpu_custom_call.1} parent=1 // pred_check
      _
    $region39: #{tpu_custom_call.1} parent=1 // pred_check_branch
      %479 = sbr.rel (0) target = $region41
    $region40: #{tpu_custom_call.1} parent=1 // pred_region
      %480 = dma.done [#allocation4], 64
    $region41: #{tpu_custom_call.1} parent=1 // pred_fallthru
      _
    %481 = vsyncpa [#allocation3], 1
    %482 = vsyncpa [#allocation6], 1
    %483 = vsyncpa [#allocation4], 1

</llo_original>
